<compile_context>
chip_gen: v7x
topology: tpu7x:2x2x1
jax: 0.10.0
libtpu: 0.0.40
codegen_flags: <defaults>
</compile_context>

<pallas_src>
import functools

import jax
import jax.numpy as jnp
from jax import lax
from jax.experimental import pallas as pl
from jax.experimental.pallas import tpu as pltpu


def _round_up(n, m):
    return ((n + m - 1) // m) * m


def _apply_activation(h, activation):
    if activation == "ReLU":
        return jnp.maximum(h, 0.0)
    elif activation == "sigmoid":
        return jax.nn.sigmoid(h)
    elif activation == "LeakyReLU":
        # Matches nn.LeakyReLU(negative_slope=0.1) in the reference module.
        return jnp.where(h > 0, h, 0.1 * h)
    raise ValueError(f"{activation} not an available activation")


def _mlp_kernel(*refs, n_layers, has_bias, activation):
    """Whole-network forward on one batch tile; batch lives in the lane dim.

    refs = (x_ref, w_0 ... w_{L-1}, [bias_smem_ref], out_ref)
      x_ref   : (TILE_B, in_features)   -- native batch-major layout (no host transpose)
      w_i     : (out_i, in_i)           -- native PyTorch Linear weight layout
      out_ref : (1, TILE_B)             -- lane-dense output tile
    """
    x_ref = refs[0]
    w_refs = refs[1:1 + n_layers]
    b_ref = refs[1 + n_layers] if has_bias else None
    out_ref = refs[-1]

    # Layer 0: fold the batch-major -> feature-major transpose into the MXU
    # contraction: (out0, in0) x (TILE_B, in0) -> (out0, TILE_B).
    h = lax.dot_general(
        w_refs[0][...], x_ref[...],
        dimension_numbers=(((1,), (1,)), ((), ())),
        preferred_element_type=jnp.float32)

    if n_layers == 1:
        # Single layer == nn.Linear(input_size, 1) WITH bias, no activation.
        if b_ref is not None:
            h = h + b_ref[0]  # scalar bias read from SMEM
    else:
        # Hidden layers: act(W_i @ h).  Dropout p=0.0 -> identity (no-op).
        h = _apply_activation(h, activation)
        for i in range(1, n_layers - 1):
            h = jnp.dot(w_refs[i][...], h, preferred_element_type=jnp.float32)
            h = _apply_activation(h, activation)
        # Final layer: no activation, bias=False in the reference module.
        h = jnp.dot(w_refs[-1][...], h, preferred_element_type=jnp.float32)

    out_ref[...] = h.astype(out_ref.dtype)


def mlp_forward(x, weights, bias=None, activation="ReLU", tile_b_max=16384):
    """Run the Pallas MLP kernel.

    Args:
      x:       (batch, input_size) float32
      weights: list of PyTorch-style Linear weights, each (out_i, in_i)
      bias:    optional (1,) bias for the single-layer case (final width 1)
      activation: 'ReLU' | 'sigmoid' | 'LeakyReLU'
    Returns:
      (batch, 1) float32
    """
    if activation not in ("ReLU", "sigmoid", "LeakyReLU"):
        raise ValueError(f"{activation} not an available activation")

    n_layers = len(weights)
    has_bias = bias is not None
    batch, in_features = x.shape

    x = jnp.asarray(x, jnp.float32)
    ws = [jnp.asarray(w, jnp.float32) for w in weights]

    # ---- Batch tiling ----------------------------------------------------
    # Pad batch only up to the next multiple of 128 (lane width): waste bounded
    # to <128 rows.  Padded batch columns are independent and sliced off; no
    # cross-column reductions happen in the kernel.
    padded_b = _round_up(batch, 128)
    if padded_b > batch:
        x = jnp.pad(x, ((0, padded_b - batch), (0, 0)))

    tile_b_max = max(128, _round_up(int(tile_b_max), 128))  # keep lane-aligned
    # v7x: keep >=2 grid steps when the batch allows so the "parallel" axis can
    # shard across both TensorCores.  Neutral on v5e/v6e (single TC).
    two_step_cap = max(128, _round_up(pl.cdiv(padded_b, 2), 128))
    tile_b = min(tile_b_max, padded_b, two_step_cap)
    n_tiles = pl.cdiv(padded_b, tile_b)  # partial trailing block is masked

    args = [x] + ws

    # x tile walks the batch; the tiny weights use constant index_maps so they
    # stay VMEM-resident across all grid steps.
    x_spec_kwargs = {}
    if n_tiles >= 3:
        # Per-step compute is tiny; a 3rd buffer hides DMA issue latency.
        x_spec_kwargs["pipeline_mode"] = pl.Buffered(3)
    in_specs = [pl.BlockSpec((tile_b, in_features), lambda i: (i, 0),
                             **x_spec_kwargs)]
    in_specs += [pl.BlockSpec(w.shape, lambda i: (0, 0)) for w in ws]

    if has_bias:
        b = jnp.asarray(bias, jnp.float32).reshape(-1)
        assert b.shape[0] == 1, "bias only supported for final width 1"
        args.append(b)
        # Scalar bias lives in SMEM (no VMEM buffer for a 1-element operand).
        in_specs.append(pl.BlockSpec(memory_space=pltpu.MemorySpace.SMEM))

    out_spec = pl.BlockSpec((1, tile_b), lambda i: (0, i))

    # Advisory cost estimate so XLA schedules/overlaps the call sensibly.
    flops = 2 * padded_b * sum(int(w.shape[0]) * int(w.shape[1]) for w in ws)
    transcendentals = (padded_b * sum(int(w.shape[0]) for w in ws[:-1])
                       if activation == "sigmoid" else 0)
    bytes_accessed = int(x.size * 4 + sum(int(w.size) for w in ws) * 4
                         + padded_b * 4 + (4 if has_bias else 0))

    # VMEM budget: 3 x-tile buffers + 2 out-tile buffers + resident weights.
    x_tile_bytes = tile_b * in_features * 4
    out_tile_bytes = tile_b * 4
    w_bytes = sum(int(w.size) for w in ws) * 4
    working_set = 3 * x_tile_bytes + 2 * out_tile_bytes + w_bytes
    vmem_limit = None
    if working_set > (12 << 20):
        # Headroom, while staying under v7x's 64 MiB physical VMEM per core.
        vmem_limit = int(min(2 * working_set + (4 << 20), 60 << 20))

    kernel = functools.partial(
        _mlp_kernel, n_layers=n_layers, has_bias=has_bias, activation=activation)

    out = pl.pallas_call(
        kernel,
        out_shape=jax.ShapeDtypeStruct((1, padded_b), jnp.float32),
        grid=(n_tiles,),
        in_specs=in_specs,
        out_specs=out_spec,
        compiler_params=pltpu.CompilerParams(
            dimension_semantics=("parallel",),
            vmem_limit_bytes=vmem_limit),
        cost_estimate=pl.CostEstimate(
            flops=flops,
            transcendentals=transcendentals,
            bytes_accessed=bytes_accessed),
    )(*args)

    # Back to PyTorch layout: (batch, 1), dropping batch padding.
    return out[0, :batch].reshape(batch, 1)


def _ref_forward(x, weights, bias=None, activation="ReLU"):
    """Pure-JAX reference mirroring the PyTorch forward."""
    acts = {
        "ReLU": lambda h: jnp.maximum(h, 0.0),
        "sigmoid": jax.nn.sigmoid,
        "LeakyReLU": lambda h: jnp.where(h > 0, h, 0.1 * h),
    }
    h = x
    for w in weights[:-1]:
        h = acts[activation](h @ w.T)
    h = h @ weights[-1].T
    if bias is not None:
        h = h + bias
    return h


def _make_weights(key, sizes):
    weights = []
    keys = jax.random.split(key, len(sizes) - 1)
    for i in range(len(sizes) - 1):
        bound = 1.0 / float(sizes[i]) ** 0.5
        w = jax.random.uniform(
            keys[i], (sizes[i + 1], sizes[i]),
            minval=-bound, maxval=bound, dtype=jnp.float32)
        weights.append(w)
    return weights


if __name__ == "__main__":
    key = jax.random.PRNGKey(0)
    k_x, k_wa, k_wb, k_wc, k_x2 = jax.random.split(key, 5)

    # ---- Config A: multi-layer (n_layers=3, bias=False), ReLU ----
    batch, input_size, hidden = 8, 4, 16
    sizes = [input_size, hidden, hidden, 1]
    x = jax.random.normal(k_x, (batch, input_size), dtype=jnp.float32)
    weights = _make_weights(k_wa, sizes)

    out = jax.block_until_ready(mlp_forward(x, weights, activation="ReLU"))
    ref = _ref_forward(x, weights, activation="ReLU")
    assert out.shape == (batch, 1)
    assert jnp.allclose(out, ref, atol=1e-5, rtol=1e-5), "multi-layer mismatch"

    # ---- Config A': same network, sigmoid activation ----
    out_s = jax.block_until_ready(mlp_forward(x, weights, activation="sigmoid"))
    ref_s = _ref_forward(x, weights, activation="sigmoid")
    assert jnp.allclose(out_s, ref_s, atol=1e-5, rtol=1e-5), "sigmoid mismatch"

    # ---- Config B: single layer (n_layers=1, WITH bias) ----
    w1 = jax.random.uniform(k_wb, (1, input_size),
                            minval=-1.0, maxval=1.0, dtype=jnp.float32)
    b1 = jnp.asarray([0.25], dtype=jnp.float32)
    out1 = jax.block_until_ready(mlp_forward(x, [w1], bias=b1, activation="ReLU"))
    ref1 = _ref_forward(x, [w1], bias=b1, activation="ReLU")
    assert out1.shape == (batch, 1)
    assert jnp.allclose(out1, ref1, atol=1e-5, rtol=1e-5), "single-layer mismatch"

    # ---- Config C: larger non-aligned batch, multi-tile grid, LeakyReLU ----
    batch_c = 300
    xc = jax.random.normal(k_x2, (batch_c, input_size), dtype=jnp.float32)
    weights_c = _make_weights(k_wc, [input_size, hidden, 1])
    out_c = jax.block_until_ready(
        mlp_forward(xc, weights_c, activation="LeakyReLU", tile_b_max=128))
    ref_c = _ref_forward(xc, weights_c, activation="LeakyReLU")
    assert out_c.shape == (batch_c, 1)
    assert jnp.allclose(out_c, ref_c, atol=1e-5, rtol=1e-5), "tiled-batch mismatch"

    print("KERNEL_OK")
</pallas_src>

<mosaic_0001>
module attributes {stable_mosaic.version = 11 : i64} {
  func.func @_mlp_kernel(%arg0: i32, %arg1: memref<128x4xf32, #tpu.memory_space<vmem>>, %arg2: memref<16x4xf32, #tpu.memory_space<vmem>>, %arg3: memref<16x16xf32, #tpu.memory_space<vmem>>, %arg4: memref<1x16xf32, #tpu.memory_space<vmem>>, %arg5: memref<1x128xf32, #tpu.memory_space<vmem>>) attributes {dimension_semantics = [#tpu.dimension_semantics<parallel>], iteration_bounds = array<i64: 1>, scalar_prefetch = 0 : i64, scratch_operands = 0 : i64, tpu.core_type = #tpu.core_type<tc>, window_params = [{transform_indices = @transform_0, window_bounds = array<i64: 128, 4>}, {pipeline_mode = #tpu.pipeline_mode<synchronous>, transform_indices = @transform_1, window_bounds = array<i64: 16, 4>}, {pipeline_mode = #tpu.pipeline_mode<synchronous>, transform_indices = @transform_2, window_bounds = array<i64: 16, 16>}, {pipeline_mode = #tpu.pipeline_mode<synchronous>, transform_indices = @transform_3, window_bounds = array<i64: 1, 16>}, {transform_indices = @transform_4, window_bounds = array<i64: 1, 128>}]} {
    %c0 = arith.constant 0 : index
    %c0_0 = arith.constant 0 : index
    %0 = vector.load %arg2[%c0, %c0_0] : memref<16x4xf32, #tpu.memory_space<vmem>>, vector<16x4xf32>
    %c0_1 = arith.constant 0 : index
    %c0_2 = arith.constant 0 : index
    %1 = vector.load %arg1[%c0_1, %c0_2] : memref<128x4xf32, #tpu.memory_space<vmem>>, vector<128x4xf32>
    %cst = arith.constant dense<0.000000e+00> : vector<16x128xf32>
    %2 = tpu.matmul %0, %1, %cst {dimension_numbers = #tpu.dot_dimension_numbers<[1], [1], [0], [0], [0, 0, 1, 0], [], []>} : vector<16x4xf32>, vector<128x4xf32>, vector<16x128xf32> -> vector<16x128xf32>
    %cst_3 = arith.constant 0.000000e+00 : f32
    %3 = vector.broadcast %cst_3 : f32 to vector<16x128xf32>
    %4 = arith.maximumf %2, %3 : vector<16x128xf32>
    %c0_4 = arith.constant 0 : index
    %c0_5 = arith.constant 0 : index
    %5 = vector.load %arg3[%c0_4, %c0_5] : memref<16x16xf32, #tpu.memory_space<vmem>>, vector<16x16xf32>
    %cst_6 = arith.constant dense<0.000000e+00> : vector<16x128xf32>
    %6 = tpu.matmul %5, %4, %cst_6 {dimension_numbers = #tpu.dot_dimension_numbers<[1], [0], [0], [1], [0, 0, 1, 1], [], []>} : vector<16x16xf32>, vector<16x128xf32>, vector<16x128xf32> -> vector<16x128xf32>
    %cst_7 = arith.constant 0.000000e+00 : f32
    %7 = vector.broadcast %cst_7 : f32 to vector<16x128xf32>
    %8 = arith.maximumf %6, %7 : vector<16x128xf32>
    %c0_8 = arith.constant 0 : index
    %c0_9 = arith.constant 0 : index
    %9 = vector.load %arg4[%c0_8, %c0_9] : memref<1x16xf32, #tpu.memory_space<vmem>>, vector<1x16xf32>
    %cst_10 = arith.constant dense<0.000000e+00> : vector<1x128xf32>
    %10 = tpu.matmul %9, %8, %cst_10 {dimension_numbers = #tpu.dot_dimension_numbers<[1], [0], [0], [1], [0, 0, 1, 1], [], []>} : vector<1x16xf32>, vector<16x128xf32>, vector<1x128xf32> -> vector<1x128xf32>
    %c0_11 = arith.constant 0 : index
    %c0_12 = arith.constant 0 : index
    %11 = vector.load %arg5[%c0_11, %c0_12] : memref<1x128xf32, #tpu.memory_space<vmem>>, vector<1x128xf32>
    tpu.vector_store %arg5[%c0_11, %c0_12], %10 {strides = array<i32>} : memref<1x128xf32, #tpu.memory_space<vmem>>, vector<1x128xf32>,
    return
  }
  func.func @transform_0(%arg0: i32) -> (i32, i32) {
    %c0_i32 = arith.constant 0 : i32
    %c0_i32_0 = arith.constant 0 : i32
    return %arg0, %c0_i32 : i32, i32
  }
  func.func @transform_1(%arg0: i32) -> (i32, i32) {
    %c0_i32 = arith.constant 0 : i32
    %c0_i32_0 = arith.constant 0 : i32
    %c0_i32_1 = arith.constant 0 : i32
    return %c0_i32, %c0_i32_0 : i32, i32
  }
  func.func @transform_2(%arg0: i32) -> (i32, i32) {
    %c0_i32 = arith.constant 0 : i32
    %c0_i32_0 = arith.constant 0 : i32
    %c0_i32_1 = arith.constant 0 : i32
    return %c0_i32, %c0_i32_0 : i32, i32
  }
  func.func @transform_3(%arg0: i32) -> (i32, i32) {
    %c0_i32 = arith.constant 0 : i32
    %c0_i32_0 = arith.constant 0 : i32
    %c0_i32_1 = arith.constant 0 : i32
    return %c0_i32, %c0_i32_0 : i32, i32
  }
  func.func @transform_4(%arg0: i32) -> (i32, i32) {
    %c0_i32 = arith.constant 0 : i32
    %c0_i32_0 = arith.constant 0 : i32
    return %c0_i32, %arg0 : i32, i32
  }
}

</mosaic_0001>

<llo_original>
// kernel: tpu_custom_call.1
$region0: #{tpu_custom_call.1}
  #allocation0 [shape = 'u32[]', space=smem, size = 0x4, offset = 0x4, fixed_abs, tag = 'smem constant byte address 0x4 - core index']
  #allocation1 [shape = 'u32[144,128]{1,0:T(1,128)}', space=vmem, size = 0x12000, scoped, tag = 'internal scratch']
  %s0 = inlined_call_operand.vmem [shape: f32[128,4], index: 0, kind: input, shape index: {}]
  %s1 = inlined_call_operand.vmem [shape: f32[16,4], index: 1, kind: input, shape index: {}]
  %s2 = inlined_call_operand.vmem [shape: f32[16,16], index: 2, kind: input, shape index: {}]
  %s3 = inlined_call_operand.vmem [shape: f32[1,16], index: 3, kind: input, shape index: {}]
  %s4 = inlined_call_operand.hbm [shape: f32[1,128], index: 4, kind: output, shape index: {}]
  %s5 = sld [smem:[#allocation0]]
  $region26: #{tpu_custom_call.1} parent=0
    _
  %s7 = ssub.s32 1, %s5
  %s8 = scalar_select 0, %s7, %s5
  $region1: #{tpu_custom_call.1} parent=0
    #allocation2 [shape = 'u8[512]{0}', space=vmem, size = 0x400, scoped, tag = 'output window, operand 0, single buffered']
    #allocation3 [shape = 's32[1]{0}', space=sflag, size = 0x4, scoped, tag = 'scoped memory for tpu_custom_call.1']
    %9 = vsyncpa [#allocation3], 0
    // Predicated region
    $region2: #{tpu_custom_call.1} parent=1 // pred_check
      _
    $region3: #{tpu_custom_call.1} parent=1 // pred_check_branch
      %11 = sbr.rel (0) target = $region5
    $region4: #{tpu_custom_call.1} parent=1 // pred_region
      _
    $region5: #{tpu_custom_call.1} parent=1 // pred_fallthru
      _
    // Predicated region
    $region6: #{tpu_custom_call.1} parent=1 // pred_check
      _
    $region7: #{tpu_custom_call.1} parent=1 // pred_check_branch
      %13 = sbr.rel (0) target = $region9
    $region8: #{tpu_custom_call.1} parent=1 // pred_region
      _
    $region9: #{tpu_custom_call.1} parent=1 // pred_fallthru
      _
    // Predicated region
    $region10: #{tpu_custom_call.1} parent=1 // pred_check
      _
    $region11: #{tpu_custom_call.1} parent=1 // pred_check_branch
      %15 = sbr.rel (0) target = $region13
    $region12: #{tpu_custom_call.1} parent=1 // pred_region
      _
    $region13: #{tpu_custom_call.1} parent=1 // pred_fallthru
      _
    // Predicated region
    $region14: #{tpu_custom_call.1} parent=1 // pred_check
      _
    $region15: #{tpu_custom_call.1} parent=1 // pred_check_branch
      %17 = sbr.rel (0) target = $region17
    $region16: #{tpu_custom_call.1} parent=1 // pred_region
      _
    $region17: #{tpu_custom_call.1} parent=1 // pred_fallthru
      _
    %v18 = vld [vmem:[%s1] sm:$0xff]
    %v19 = vld [vmem:[%s1 + $0x8] sm:$0xff]
    %v20 = vld [vmem:[%s0] sm:$0xff]
    %v21 = vld [vmem:[%s0 + $0x8] sm:$0xff]
    %v22 = vld [vmem:[%s0 + $0x10] sm:$0xff]
    %v23 = vld [vmem:[%s0 + $0x18] sm:$0xff]
    %v24 = vld [vmem:[%s0 + $0x20] sm:$0xff]
    %v25 = vld [vmem:[%s0 + $0x28] sm:$0xff]
    %v26 = vld [vmem:[%s0 + $0x30] sm:$0xff]
    %v27 = vld [vmem:[%s0 + $0x38] sm:$0xff]
    %v28 = vld [vmem:[%s0 + $0x40] sm:$0xff]
    %v29 = vld [vmem:[%s0 + $0x48] sm:$0xff]
    %v30 = vld [vmem:[%s0 + $0x50] sm:$0xff]
    %v31 = vld [vmem:[%s0 + $0x58] sm:$0xff]
    %v32 = vld [vmem:[%s0 + $0x60] sm:$0xff]
    %v33 = vld [vmem:[%s0 + $0x68] sm:$0xff]
    %v34 = vld [vmem:[%s0 + $0x70] sm:$0xff]
    %v35 = vld [vmem:[%s0 + $0x78] sm:$0xff]
    %vm36 = vcmask 31744
    %v38 = vsel %vm36, %v18, 0
    %v41 = vsel %vm36, %v19, 0
    %v44 = vsel %vm36, %v20, 0
    %v47 = vsel %vm36, %v21, 0
    %v50 = vsel %vm36, %v22, 0
    %v53 = vsel %vm36, %v23, 0
    %v56 = vsel %vm36, %v24, 0
    %v59 = vsel %vm36, %v25, 0
    %v62 = vsel %vm36, %v26, 0
    %v65 = vsel %vm36, %v27, 0
    %v68 = vsel %vm36, %v28, 0
    %v71 = vsel %vm36, %v29, 0
    %v74 = vsel %vm36, %v30, 0
    %v77 = vsel %vm36, %v31, 0
    %v80 = vsel %vm36, %v32, 0
    %v83 = vsel %vm36, %v33, 0
    %v86 = vsel %vm36, %v34, 0
    %v89 = vsel %vm36, %v35, 0
    %91 = vmatprep.subr.mxu0 0.0
    %92 = vmatpush1.xpose.msra.mxu0 %v44
    %93 = vmatprep.subr.mxu0 0.0
    %94 = vmatpush1.xpose.msra.mxu0 %v47
    %95 = vmatprep.subr.mxu0 0.0
    %96 = vmatpush1.xpose.msra.mxu0 %v50
    %97 = vmatprep.subr.mxu0 0.0
    %98 = vmatpush1.xpose.msra.mxu0 %v53
    %99 = vmatprep.subr.mxu0 0.0
    %100 = vmatpush1.xpose.msra.mxu0 %v56
    %101 = vmatprep.subr.mxu0 0.0
    %102 = vmatpush1.xpose.msra.mxu0 %v59
    %103 = vmatprep.subr.mxu0 0.0
    %104 = vmatpush1.xpose.msra.mxu0 %v62
    %105 = vmatprep.subr.mxu0 0.0
    %106 = vmatpush1.xpose.msra.mxu0 %v65
    %107 = vmatprep.subr.mxu0 0.0
    %108 = vmatpush1.xpose.msra.mxu0 %v68
    %109 = vmatprep.subr.mxu0 0.0
    %110 = vmatpush1.xpose.msra.mxu0 %v71
    %111 = vmatprep.subr.mxu0 0.0
    %112 = vmatpush1.xpose.msra.mxu0 %v74
    %113 = vmatprep.subr.mxu0 0.0
    %114 = vmatpush1.xpose.msra.mxu0 %v77
    %115 = vmatprep.subr.mxu0 0.0
    %116 = vmatpush1.xpose.msra.mxu0 %v80
    %117 = vmatprep.subr.mxu0 0.0
    %118 = vmatpush1.xpose.msra.mxu0 %v83
    %119 = vmatprep.subr.mxu0 0.0
    %120 = vmatpush1.xpose.msra.mxu0 %v86
    %121 = vmatprep.subr.mxu0 0.0
    %122 = vmatpush1.xpose.msra.mxu0 %v89
    %123 = vmatprep.subr.mxu0 0.0
    %124 = vmatpush1.xpose.msra.mxu0 0.0
    %125 = vmatprep.subr.mxu0 0.0
    %126 = vmatpush1.xpose.msra.mxu0 0.0
    %127 = vmatprep.subr.mxu0 0.0
    %128 = vmatpush1.xpose.msra.mxu0 0.0
    %129 = vmatprep.subr.mxu0 0.0
    %130 = vmatpush1.xpose.msra.mxu0 0.0
    %131 = vmatprep.subr.mxu0 0.0
    %132 = vmatpush1.xpose.msra.mxu0 0.0
    %133 = vmatprep.subr.mxu0 0.0
    %134 = vmatpush1.xpose.msra.mxu0 0.0
    %135 = vmatprep.subr.mxu0 0.0
    %136 = vmatpush1.xpose.msra.mxu0 0.0
    %137 = vmatprep.subr.mxu0 0.0
    %138 = vmatpush1.xpose.msra.mxu0 0.0
    %139 = vmatprep.subr.mxu0 0.0
    %140 = vmatpush1.xpose.msra.mxu0 0.0
    %141 = vmatprep.subr.mxu0 0.0
    %142 = vmatpush1.xpose.msra.mxu0 0.0
    %143 = vmatprep.subr.mxu0 0.0
    %144 = vmatpush1.xpose.msra.mxu0 0.0
    %145 = vmatprep.subr.mxu0 0.0
    %146 = vmatpush1.xpose.msra.mxu0 0.0
    %147 = vmatprep.subr.mxu0 0.0
    %148 = vmatpush1.xpose.msra.mxu0 0.0
    %149 = vmatprep.subr.mxu0 0.0
    %150 = vmatpush1.xpose.msra.mxu0 0.0
    %151 = vmatprep.subr.mxu0 0.0
    %152 = vmatpush1.xpose.msra.mxu0 0.0
    %153 = vmatprep.subr.mxu0 0.0
    %154 = vmatpush1.xpose.msra.mxu0 0.0
    %155 = vmatprep.mubr.f32.mxu0 0.0
    %156 = vmatmul.mubr.f32.gmra.mrb[0].mxu0 %v38
    %v157 = vpop.f32.mrb[0].mxu0
    %v158 = vadd.f32 0.0, %v157
    %v159 = vpop.f32.mrb[0].mxu0
    %160 = vmatprep.mubr.f32.mxu0 0.0
    %161 = vmatmul.mubr.f32.gmra.mrb[0].mxu0 %v41
    %v162 = vpop.f32.mrb[0].mxu0
    %v163 = vadd.f32 0.0, %v162
    %v164 = vpop.f32.mrb[0].mxu0
    %165 = vdwg.mxu0
    %v166 = vmax.f32 %v158, 0.0
    %v167 = vmax.f32 %v163, 0.0
    %v168 = vld [vmem:[%s2] sm:$0xff]
    %v169 = vld [vmem:[%s2 + $0x8] sm:$0xff]
    %vm170 = vcmask 130048
    %v172 = vsel %vm170, %v168, 0
    %v175 = vsel %vm170, %v169, 0
    %177 = vmatprep.subr.mxu0 0.0
    %178 = vmatpush1.msra.mxu0 %v166
    %179 = vmatprep.subr.mxu0 0.0
    %180 = vmatpush1.msra.mxu0 %v167
    %181 = vmatprep.subr.mxu0 0.0
    %182 = vmatpush1.msra.mxu0 0.0
    %183 = vmatprep.subr.mxu0 0.0
    %184 = vmatpush1.msra.mxu0 0.0
    %185 = vmatprep.subr.mxu0 0.0
    %186 = vmatpush1.msra.mxu0 0.0
    %187 = vmatprep.subr.mxu0 0.0
    %188 = vmatpush1.msra.mxu0 0.0
    %189 = vmatprep.subr.mxu0 0.0
    %190 = vmatpush1.msra.mxu0 0.0
    %191 = vmatprep.subr.mxu0 0.0
    %192 = vmatpush1.msra.mxu0 0.0
    %193 = vmatprep.subr.mxu0 0.0
    %194 = vmatpush1.msra.mxu0 0.0
    %195 = vmatprep.subr.mxu0 0.0
    %196 = vmatpush1.msra.mxu0 0.0
    %197 = vmatprep.subr.mxu0 0.0
    %198 = vmatpush1.msra.mxu0 0.0
    %199 = vmatprep.subr.mxu0 0.0
    %200 = vmatpush1.msra.mxu0 0.0
    %201 = vmatprep.subr.mxu0 0.0
    %202 = vmatpush1.msra.mxu0 0.0
    %203 = vmatprep.subr.mxu0 0.0
    %204 = vmatpush1.msra.mxu0 0.0
    %205 = vmatprep.subr.mxu0 0.0
    %206 = vmatpush1.msra.mxu0 0.0
    %207 = vmatprep.subr.mxu0 0.0
    %208 = vmatpush1.msra.mxu0 0.0
    %209 = vmatprep.subr.mxu0 0.0
    %210 = vmatpush1.msra.mxu0 0.0
    %211 = vmatprep.subr.mxu0 0.0
    %212 = vmatpush1.msra.mxu0 0.0
    %213 = vmatprep.subr.mxu0 0.0
    %214 = vmatpush1.msra.mxu0 0.0
    %215 = vmatprep.subr.mxu0 0.0
    %216 = vmatpush1.msra.mxu0 0.0
    %217 = vmatprep.subr.mxu0 0.0
    %218 = vmatpush1.msra.mxu0 0.0
    %219 = vmatprep.subr.mxu0 0.0
    %220 = vmatpush1.msra.mxu0 0.0
    %221 = vmatprep.subr.mxu0 0.0
    %222 = vmatpush1.msra.mxu0 0.0
    %223 = vmatprep.subr.mxu0 0.0
    %224 = vmatpush1.msra.mxu0 0.0
    %225 = vmatprep.subr.mxu0 0.0
    %226 = vmatpush1.msra.mxu0 0.0
    %227 = vmatprep.subr.mxu0 0.0
    %228 = vmatpush1.msra.mxu0 0.0
    %229 = vmatprep.subr.mxu0 0.0
    %230 = vmatpush1.msra.mxu0 0.0
    %231 = vmatprep.subr.mxu0 0.0
    %232 = vmatpush1.msra.mxu0 0.0
    %233 = vmatprep.subr.mxu0 0.0
    %234 = vmatpush1.msra.mxu0 0.0
    %235 = vmatprep.subr.mxu0 0.0
    %236 = vmatpush1.msra.mxu0 0.0
    %237 = vmatprep.subr.mxu0 0.0
    %238 = vmatpush1.msra.mxu0 0.0
    %239 = vmatprep.subr.mxu0 0.0
    %240 = vmatpush1.msra.mxu0 0.0
    %241 = vmatprep.mubr.f32.mxu0 0.0
    %242 = vmatmul.mubr.f32.gmra.mrb[0].mxu0 %v172
    %v243 = vpop.f32.mrb[0].mxu0
    %v244 = vadd.f32 0.0, %v243
    %v245 = vpop.f32.mrb[0].mxu0
    %246 = vmatprep.mubr.f32.mxu0 0.0
    %247 = vmatmul.mubr.f32.gmra.mrb[0].mxu0 %v175
    %v248 = vpop.f32.mrb[0].mxu0
    %v249 = vadd.f32 0.0, %v248
    %v250 = vpop.f32.mrb[0].mxu0
    %251 = vdwg.mxu0
    %v252 = vmax.f32 %v244, 0.0
    %v253 = vmax.f32 %v249, 0.0
    %v254 = vld [vmem:[%s3] sm:$0x1]
    %v256 = vsel %vm170, %v254, 0
    %258 = vmatprep.subr.mxu0 0.0
    %259 = vmatpush1.msra.mxu0 %v252
    %260 = vmatprep.subr.mxu0 0.0
    %261 = vmatpush1.msra.mxu0 %v253
    %262 = vmatprep.subr.mxu0 0.0
    %263 = vmatpush1.msra.mxu0 0.0
    %264 = vmatprep.subr.mxu0 0.0
    %265 = vmatpush1.msra.mxu0 0.0
    %266 = vmatprep.subr.mxu0 0.0
    %267 = vmatpush1.msra.mxu0 0.0
    %268 = vmatprep.subr.mxu0 0.0
    %269 = vmatpush1.msra.mxu0 0.0
    %270 = vmatprep.subr.mxu0 0.0
    %271 = vmatpush1.msra.mxu0 0.0
    %272 = vmatprep.subr.mxu0 0.0
    %273 = vmatpush1.msra.mxu0 0.0
    %274 = vmatprep.subr.mxu0 0.0
    %275 = vmatpush1.msra.mxu0 0.0
    %276 = vmatprep.subr.mxu0 0.0
    %277 = vmatpush1.msra.mxu0 0.0
    %278 = vmatprep.subr.mxu0 0.0
    %279 = vmatpush1.msra.mxu0 0.0
    %280 = vmatprep.subr.mxu0 0.0
    %281 = vmatpush1.msra.mxu0 0.0
    %282 = vmatprep.subr.mxu0 0.0
    %283 = vmatpush1.msra.mxu0 0.0
    %284 = vmatprep.subr.mxu0 0.0
    %285 = vmatpush1.msra.mxu0 0.0
    %286 = vmatprep.subr.mxu0 0.0
    %287 = vmatpush1.msra.mxu0 0.0
    %288 = vmatprep.subr.mxu0 0.0
    %289 = vmatpush1.msra.mxu0 0.0
    %290 = vmatprep.subr.mxu0 0.0
    %291 = vmatpush1.msra.mxu0 0.0
    %292 = vmatprep.subr.mxu0 0.0
    %293 = vmatpush1.msra.mxu0 0.0
    %294 = vmatprep.subr.mxu0 0.0
    %295 = vmatpush1.msra.mxu0 0.0
    %296 = vmatprep.subr.mxu0 0.0
    %297 = vmatpush1.msra.mxu0 0.0
    %298 = vmatprep.subr.mxu0 0.0
    %299 = vmatpush1.msra.mxu0 0.0
    %300 = vmatprep.subr.mxu0 0.0
    %301 = vmatpush1.msra.mxu0 0.0
    %302 = vmatprep.subr.mxu0 0.0
    %303 = vmatpush1.msra.mxu0 0.0
    %304 = vmatprep.subr.mxu0 0.0
    %305 = vmatpush1.msra.mxu0 0.0
    %306 = vmatprep.subr.mxu0 0.0
    %307 = vmatpush1.msra.mxu0 0.0
    %308 = vmatprep.subr.mxu0 0.0
    %309 = vmatpush1.msra.mxu0 0.0
    %310 = vmatprep.subr.mxu0 0.0
    %311 = vmatpush1.msra.mxu0 0.0
    %312 = vmatprep.subr.mxu0 0.0
    %313 = vmatpush1.msra.mxu0 0.0
    %314 = vmatprep.subr.mxu0 0.0
    %315 = vmatpush1.msra.mxu0 0.0
    %316 = vmatprep.subr.mxu0 0.0
    %317 = vmatpush1.msra.mxu0 0.0
    %318 = vmatprep.subr.mxu0 0.0
    %319 = vmatpush1.msra.mxu0 0.0
    %320 = vmatprep.subr.mxu0 0.0
    %321 = vmatpush1.msra.mxu0 0.0
    %322 = vmatprep.mubr.f32.mxu0 0.0
    %323 = vmatmul.mubr.f32.gmra.mrb[0].mxu0 %v256
    %v324 = vpop.f32.mrb[0].mxu0
    %v325 = vadd.f32 0.0, %v324
    %v326 = vpop.f32.mrb[0].mxu0
    %327 = vdwg.mxu0
    %328 = vst [vmem:[#allocation2] sm:$0x1] %v325
    // Predicated region
    $region18: #{tpu_custom_call.1} parent=1 // pred_check
      _
    $region19: #{tpu_custom_call.1} parent=1 // pred_check_branch
      %330 = sbr.rel (0) target = $region21
    $region20: #{tpu_custom_call.1} parent=1 // pred_region
      %s332 = ssub.s32 16, 16
      %333 = vsyncadd [#allocation3], %s332
      %s335 = sshll.u32 [#allocation2], 4
      %s336 = int_to_ptr.vmem [resolvable:$true] %s335
      %338 = dma.vmem_to_hbm [thread:$0]  %s336, 16, %s4, [#allocation3]
    $region21: #{tpu_custom_call.1} parent=1 // pred_fallthru
      _
    // Predicated region
    $region22: #{tpu_custom_call.1} parent=1 // pred_check
      _
    $region23: #{tpu_custom_call.1} parent=1 // pred_check_branch
      %340 = sbr.rel (0) target = $region25
    $region24: #{tpu_custom_call.1} parent=1 // pred_region
      %341 = dma.done [#allocation3], 16
    $region25: #{tpu_custom_call.1} parent=1 // pred_fallthru
      _
    %342 = vsyncpa [#allocation3], 1

</llo_original>
